<compile_context>
chip_gen: v5e
topology: v5e:2x2
jax: 0.10.0
libtpu: 0.0.40
codegen_flags: <defaults>
</compile_context>

<pallas_src>
import jax
import jax.numpy as jnp
from jax import lax
from jax.experimental import pallas as pl
from jax.experimental.pallas import tpu as pltpu


def _round_up(x, m):
    return (x + m - 1) // m * m


def _vmem_budget_bytes():
    """~75% of physical VMEM; conservative 48 MiB (v7x-sized) if undetectable."""
    try:
        cap = int(pltpu.get_tpu_info().vmem_capacity_bytes)
    except Exception:
        cap = 64 * 1024 * 1024
    return (cap * 3) // 4


def _pick_block_b(B, N, S, Kp, D, out_itemsize, resident_bytes, vmem_budget,
                  target_rows=4096):
    """Largest batch tile Bt (divisor of B) whose double-buffered working set
    fits the VMEM budget and whose Bt*N row count stays near target_rows,
    preferring an even grid length >= 2 (v7x has 2 TensorCores)."""

    def workset(bt):
        rows = bt * N
        patch_blk = rows * Kp * 2                 # bf16 input block
        out_blk = bt * S * D * out_itemsize       # output block
        emb_tmp = rows * D * 4                    # f32 matmul + pos-add temporary
        return 2 * patch_blk + 2 * out_blk + emb_tmp + resident_bytes

    divisors = [d for d in range(1, B + 1) if B % d == 0]
    # (8,128) rule: the flattened patch block has Bt*N rows (or the full B*N).
    legal = [d for d in divisors if d == B or (d * N) % 8 == 0]
    fits = [d for d in legal
            if d * N <= target_rows and workset(d) <= vmem_budget]
    if not fits:
        return min(legal)                         # smallest legal tile
    best = max(fits)
    even = [d for d in fits if (B // d) >= 2 and (B // d) % 2 == 0]
    if even and max(even) * 2 >= best:            # trade at most 2x tile size
        best = max(even)
    return best


def _vpl_kernel(patch_ref, w_ref, cls_ref, pos_ref, pin_ref, out_ref):
    # patch_ref: (Bt*N, Kp)  bf16 flattened image patches (K zero-padded)
    # w_ref:     (Kp, D)     bf16 conv1 weight, flattened + transposed
    # cls_ref:   (1, D)      f32 class embedding + pos_emb[0]
    # pos_ref:   (N, D)      f32 pos_emb[1:]
    # pin_ref:   (n_vpro, D) f32 input visual prompts
    # out_ref:   (Bt, 1+N+n_vpro, D)
    bt, s, d = out_ref.shape
    n = pos_ref.shape[0]
    n_vpro = pin_ref.shape[0]

    # One MXU matmul per grid step, f32 accumulation.
    emb = jnp.dot(patch_ref[...], w_ref[...],
                  preferred_element_type=jnp.float32)
    # Relayout-free when N % 8 == 0; otherwise Mosaic copies the f32 block
    # here (the bf16 patch operand itself never needs an in-kernel reshape).
    emb = emb.reshape(bt, n, d) + pos_ref[...][None, :, :]

    # Direct slice stores (no in-kernel concatenate / VMEM temporary).
    out_ref[:, 0:1, :] = jnp.broadcast_to(
        cls_ref[...][None, :, :], (bt, 1, d)).astype(out_ref.dtype)
    out_ref[:, 1:1 + n, :] = emb.astype(out_ref.dtype)
    out_ref[:, 1 + n:, :] = jnp.broadcast_to(
        pin_ref[...][None, :, :], (bt, n_vpro, d)).astype(out_ref.dtype)


def vision_prompt_learner_forward(x, conv1_w, class_emb, pos_emb, p_input,
                                  p_visual, *, block_b=None,
                                  out_dtype=jnp.float32):
    """x: (B, C, H, W) NCHW.  Returns (tokens, p_visual) like the nn.Module.

    out_dtype: pass jnp.bfloat16 if the downstream transformer consumes bf16
    tokens (halves the dominant HBM output stream); default f32 preserves the
    module's numerics exactly for the class/prompt rows.
    """
    B, C, H, W = x.shape
    D, Cw, P, _ = conv1_w.shape
    assert Cw == C and H % P == 0 and W % P == 0
    gh, gw = H // P, W // P
    N = gh * gw
    K = C * P * P
    n_vpro = p_input.shape[0]
    S = 1 + N + n_vpro
    Kp = _round_up(K, 128)                 # lane-dense contraction dim
    out_dtype = jnp.dtype(out_dtype)

    vmem_budget = _vmem_budget_bytes()
    resident = Kp * D * 2 + (1 + N + n_vpro) * D * 4   # single-buffered operands
    if block_b is None:
        block_b = _pick_block_b(B, N, S, Kp, D, out_dtype.itemsize,
                                resident, vmem_budget)
    assert B % block_b == 0 and (block_b == B or (block_b * N) % 8 == 0)

    # --- wrapper-side im2col: non-overlapping PxP patches, channel-major to
    # match the flattened (C*P*P, D) conv weight; bf16-cast first so the
    # transpose writes half the bytes, and pre-flattened to (B*N, Kp) so the
    # kernel's MXU operand needs no in-kernel relayout.
    # TODO(synk): fuse the im2col into the kernel (memory_space=pl.ANY +
    # manual strided make_async_copy) to remove this extra HBM pass.
    xb = x.astype(jnp.bfloat16).reshape(B, C, gh, P, gw, P)
    patches = xb.transpose(0, 2, 4, 1, 3, 5).reshape(B * N, K)
    if Kp != K:
        patches = jnp.pad(patches, ((0, 0), (0, Kp - K)))

    w_flat = conv1_w.reshape(D, K).T.astype(jnp.bfloat16)   # (K, D)
    if Kp != K:
        w_flat = jnp.pad(w_flat, ((0, Kp - K), (0, 0)))

    # Split / pre-add positional embedding in the wrapper -> aligned reads.
    cls_row = (class_emb.reshape(1, D) + pos_emb[0:1, :]).astype(jnp.float32)
    pos_patch = pos_emb[1:, :].astype(jnp.float32)           # (N, D)
    pin = p_input.astype(jnp.float32)                        # (n_vpro, D)

    flops = 2 * B * N * Kp * D
    bytes_accessed = (B * N * Kp * 2 + Kp * D * 2
                      + (1 + N + n_vpro) * D * 4
                      + B * S * D * out_dtype.itemsize)

    def run(single_buffer_invariants):
        def inv(shape):
            # Grid-invariant operands: the second pipeline buffer is dead VMEM.
            if single_buffer_invariants:
                return pl.BlockSpec(shape, lambda b: (0,) * len(shape),
                                    pipeline_mode=pl.Buffered(buffer_count=1))
            return pl.BlockSpec(shape, lambda b: (0,) * len(shape))

        return pl.pallas_call(
            _vpl_kernel,
            out_shape=jax.ShapeDtypeStruct((B, S, D), out_dtype),
            grid_spec=pltpu.PrefetchScalarGridSpec(
                num_scalar_prefetch=0,
                grid=(B // block_b,),
                in_specs=[
                    pl.BlockSpec((block_b * N, Kp), lambda b: (b, 0)),
                    inv((Kp, D)),
                    inv((1, D)),
                    inv((N, D)),
                    inv((n_vpro, D)),
                ],
                out_specs=pl.BlockSpec((block_b, S, D), lambda b: (b, 0, 0)),
            ),
            compiler_params=pltpu.CompilerParams(
                dimension_semantics=("parallel",),
                vmem_limit_bytes=int(vmem_budget)),
            cost_estimate=pl.CostEstimate(
                flops=flops, transcendentals=0, bytes_accessed=bytes_accessed),
        )(patches, w_flat, cls_row, pos_patch, pin)

    try:
        out = run(single_buffer_invariants=True)
    except Exception:
        # pipeline_mode=pl.Buffered(1) not supported by this jax version:
        # fall back to default double buffering of the small invariants.
        out = run(single_buffer_invariants=False)

    return out, p_visual


def _reference_forward(x, conv1_w, class_emb, pos_emb, p_input):
    """Pure-JAX f32 reference mirroring the PyTorch module."""
    B = x.shape[0]
    D = conv1_w.shape[0]
    P = conv1_w.shape[2]
    y = lax.conv_general_dilated(
        x.astype(jnp.float32), conv1_w.astype(jnp.float32),
        window_strides=(P, P), padding="VALID",
        dimension_numbers=("NCHW", "OIHW", "NCHW"))          # (B, D, g, g)
    y = y.reshape(B, D, -1).transpose(0, 2, 1)               # (B, N, D)
    cls = jnp.broadcast_to(class_emb.reshape(1, 1, D), (B, 1, D))
    y = jnp.concatenate([cls, y], axis=1)
    y = y + pos_emb[None, :, :]
    pin = jnp.broadcast_to(p_input[None, :, :], (B,) + p_input.shape)
    return jnp.concatenate([y, pin], axis=1)


if __name__ == "__main__":
    # Small, module-consistent shapes.
    B, C, H, W = 2, 3, 16, 16         # input image, NCHW
    P = 4                             # patch size -> grid 4x4, N = 16 patches
    D = 32                            # pro_dim / visual width
    n_vpro = 4                        # N_VPRO
    layers = 4                        # transformer depth -> layers-1 deep prompts

    key = jax.random.PRNGKey(0)
    k = jax.random.split(key, 6 + (layers - 1))

    x = jax.random.normal(k[0], (B, C, H, W), dtype=jnp.float32)
    conv1_w = jax.random.normal(k[1], (D, C, P, P), dtype=jnp.float32) * 0.02
    class_emb = jax.random.normal(k[2], (D,), dtype=jnp.float32) * 0.02
    pos_emb = jax.random.normal(k[3], (1 + (H // P) * (W // P), D),
                                dtype=jnp.float32) * 0.02
    p_input = jax.random.normal(k[4], (n_vpro, D), dtype=jnp.float32) * 0.02
    p_visual = [jax.random.normal(k[5 + i], (n_vpro, D), dtype=jnp.float32) * 0.02
                for i in range(layers - 1)]

    out, p_vis_out = vision_prompt_learner_forward(
        x, conv1_w, class_emb, pos_emb, p_input, p_visual)
    out = jax.block_until_ready(out)

    ref = _reference_forward(x, conv1_w, class_emb, pos_emb, p_input)
    assert out.shape == ref.shape == (B, 1 + (H // P) * (W // P) + n_vpro, D)
    # bf16 matmul operands (f32 accumulation) -> relaxed tolerance vs f32 ref.
    assert jnp.allclose(out, ref, atol=1e-2, rtol=1e-2)
    # class-token / prompt rows are pure f32 copies -> must be (near) exact.
    assert jnp.allclose(out[:, 0, :], ref[:, 0, :], atol=1e-6)
    assert jnp.allclose(out[:, -n_vpro:, :], ref[:, -n_vpro:, :], atol=1e-6)
    assert len(p_vis_out) == layers - 1

    print("KERNEL_OK")
</pallas_src>

<mosaic_0001>
module attributes {stable_mosaic.version = 11 : i64} {
  func.func @_vpl_kernel(%arg0: i32, %arg1: memref<16x128xbf16, #tpu.memory_space<vmem>>, %arg2: memref<128x32xbf16, #tpu.memory_space<vmem>>, %arg3: memref<1x32xf32, #tpu.memory_space<vmem>>, %arg4: memref<16x32xf32, #tpu.memory_space<vmem>>, %arg5: memref<4x32xf32, #tpu.memory_space<vmem>>, %arg6: memref<1x21x32xf32, #tpu.memory_space<vmem>>) attributes {dimension_semantics = [#tpu.dimension_semantics<parallel>], iteration_bounds = array<i64: 2>, scalar_prefetch = 0 : i64, scratch_operands = 0 : i64, tpu.core_type = #tpu.core_type<tc>, window_params = [{transform_indices = @transform_0, window_bounds = array<i64: 16, 128>}, {pipeline_mode = #tpu.pipeline_mode<synchronous>, transform_indices = @transform_1, window_bounds = array<i64: 128, 32>}, {pipeline_mode = #tpu.pipeline_mode<synchronous>, transform_indices = @transform_2, window_bounds = array<i64: 1, 32>}, {pipeline_mode = #tpu.pipeline_mode<synchronous>, transform_indices = @transform_3, window_bounds = array<i64: 16, 32>}, {pipeline_mode = #tpu.pipeline_mode<synchronous>, transform_indices = @transform_4, window_bounds = array<i64: 4, 32>}, {transform_indices = @transform_5, window_bounds = array<i64: 1, 21, 32>}]} {
    %c0 = arith.constant 0 : index
    %c0_0 = arith.constant 0 : index
    %0 = vector.load %arg1[%c0, %c0_0] : memref<16x128xbf16, #tpu.memory_space<vmem>>, vector<16x128xbf16>
    %c0_1 = arith.constant 0 : index
    %c0_2 = arith.constant 0 : index
    %1 = vector.load %arg2[%c0_1, %c0_2] : memref<128x32xbf16, #tpu.memory_space<vmem>>, vector<128x32xbf16>
    %cst = arith.constant dense<0.000000e+00> : vector<16x32xf32>
    %2 = tpu.matmul %0, %1, %cst {dimension_numbers = #tpu.dot_dimension_numbers<[1], [0], [0], [1], [0, 0, 1, 1], [], []>} : vector<16x128xbf16>, vector<128x32xbf16>, vector<16x32xf32> -> vector<16x32xf32>
    %3 = vector.shape_cast %2 : vector<16x32xf32> to vector<1x16x32xf32>
    %c0_3 = arith.constant 0 : index
    %c0_4 = arith.constant 0 : index
    %4 = vector.load %arg4[%c0_3, %c0_4] : memref<16x32xf32, #tpu.memory_space<vmem>>, vector<16x32xf32>
    %5 = vector.shape_cast %4 : vector<16x32xf32> to vector<1x16x32xf32>
    %6 = arith.addf %3, %5 : vector<1x16x32xf32>
    %c0_5 = arith.constant 0 : index
    %c0_6 = arith.constant 0 : index
    %7 = vector.load %arg3[%c0_5, %c0_6] : memref<1x32xf32, #tpu.memory_space<vmem>>, vector<1x32xf32>
    %8 = vector.shape_cast %7 : vector<1x32xf32> to vector<1x1x32xf32>
    %c0_7 = arith.constant 0 : index
    %c0_8 = arith.constant 0 : index
    %c0_9 = arith.constant 0 : index
    %9 = vector.load %arg6[%c0_7, %c0_8, %c0_9] : memref<1x21x32xf32, #tpu.memory_space<vmem>>, vector<1x1x32xf32>
    tpu.vector_store %arg6[%c0_7, %c0_8, %c0_9], %8 {strides = array<i32>} : memref<1x21x32xf32, #tpu.memory_space<vmem>>, vector<1x1x32xf32>,
    %c0_10 = arith.constant 0 : index
    %c1 = arith.constant 1 : index
    %c0_11 = arith.constant 0 : index
    %10 = vector.load %arg6[%c0_10, %c1, %c0_11] : memref<1x21x32xf32, #tpu.memory_space<vmem>>, vector<1x16x32xf32>
    tpu.vector_store %arg6[%c0_10, %c1, %c0_11], %6 {strides = array<i32>} : memref<1x21x32xf32, #tpu.memory_space<vmem>>, vector<1x16x32xf32>,
    %c0_12 = arith.constant 0 : index
    %c0_13 = arith.constant 0 : index
    %11 = vector.load %arg5[%c0_12, %c0_13] : memref<4x32xf32, #tpu.memory_space<vmem>>, vector<4x32xf32>
    %12 = vector.shape_cast %11 : vector<4x32xf32> to vector<1x4x32xf32>
    %c0_14 = arith.constant 0 : index
    %c17 = arith.constant 17 : index
    %c0_15 = arith.constant 0 : index
    %13 = vector.load %arg6[%c0_14, %c17, %c0_15] : memref<1x21x32xf32, #tpu.memory_space<vmem>>, vector<1x4x32xf32>
    tpu.vector_store %arg6[%c0_14, %c17, %c0_15], %12 {strides = array<i32>} : memref<1x21x32xf32, #tpu.memory_space<vmem>>, vector<1x4x32xf32>,
    return
  }
  func.func @transform_0(%arg0: i32) -> (i32, i32) {
    %c0_i32 = arith.constant 0 : i32
    %c0_i32_0 = arith.constant 0 : i32
    return %arg0, %c0_i32 : i32, i32
  }
  func.func @transform_1(%arg0: i32) -> (i32, i32) {
    %c0_i32 = arith.constant 0 : i32
    %c0_i32_0 = arith.constant 0 : i32
    %c0_i32_1 = arith.constant 0 : i32
    return %c0_i32, %c0_i32_0 : i32, i32
  }
  func.func @transform_2(%arg0: i32) -> (i32, i32) {
    %c0_i32 = arith.constant 0 : i32
    %c0_i32_0 = arith.constant 0 : i32
    %c0_i32_1 = arith.constant 0 : i32
    return %c0_i32, %c0_i32_0 : i32, i32
  }
  func.func @transform_3(%arg0: i32) -> (i32, i32) {
    %c0_i32 = arith.constant 0 : i32
    %c0_i32_0 = arith.constant 0 : i32
    %c0_i32_1 = arith.constant 0 : i32
    return %c0_i32, %c0_i32_0 : i32, i32
  }
  func.func @transform_4(%arg0: i32) -> (i32, i32) {
    %c0_i32 = arith.constant 0 : i32
    %c0_i32_0 = arith.constant 0 : i32
    %c0_i32_1 = arith.constant 0 : i32
    return %c0_i32, %c0_i32_0 : i32, i32
  }
  func.func @transform_5(%arg0: i32) -> (i32, i32, i32) {
    %c0_i32 = arith.constant 0 : i32
    %c0_i32_0 = arith.constant 0 : i32
    %c0_i32_1 = arith.constant 0 : i32
    return %arg0, %c0_i32, %c0_i32_0 : i32, i32, i32
  }
}

module attributes {stable_mosaic.version = 11 : i64} {
  func.func @_vpl_kernel(%arg0: i32, %arg1: memref<16x128xbf16, #tpu.memory_space<vmem>>, %arg2: memref<128x32xbf16, #tpu.memory_space<vmem>>, %arg3: memref<1x32xf32, #tpu.memory_space<vmem>>, %arg4: memref<16x32xf32, #tpu.memory_space<vmem>>, %arg5: memref<4x32xf32, #tpu.memory_space<vmem>>, %arg6: memref<1x21x32xf32, #tpu.memory_space<vmem>>) attributes {dimension_semantics = [#tpu.dimension_semantics<parallel>], iteration_bounds = array<i64: 2>, scalar_prefetch = 0 : i64, scratch_operands = 0 : i64, tpu.core_type = #tpu.core_type<tc>, window_params = [{transform_indices = @transform_0, window_bounds = array<i64: 16, 128>}, {pipeline_mode = #tpu.pipeline_mode<synchronous>, transform_indices = @transform_1, window_bounds = array<i64: 128, 32>}, {pipeline_mode = #tpu.pipeline_mode<synchronous>, transform_indices = @transform_2, window_bounds = array<i64: 1, 32>}, {pipeline_mode = #tpu.pipeline_mode<synchronous>, transform_indices = @transform_3, window_bounds = array<i64: 16, 32>}, {pipeline_mode = #tpu.pipeline_mode<synchronous>, transform_indices = @transform_4, window_bounds = array<i64: 4, 32>}, {transform_indices = @transform_5, window_bounds = array<i64: 1, 21, 32>}]} {
    %c0 = arith.constant 0 : index
    %c0_0 = arith.constant 0 : index
    %0 = vector.load %arg1[%c0, %c0_0] : memref<16x128xbf16, #tpu.memory_space<vmem>>, vector<16x128xbf16>
    %c0_1 = arith.constant 0 : index
    %c0_2 = arith.constant 0 : index
    %1 = vector.load %arg2[%c0_1, %c0_2] : memref<128x32xbf16, #tpu.memory_space<vmem>>, vector<128x32xbf16>
    %cst = arith.constant dense<0.000000e+00> : vector<16x32xf32>
    %2 = tpu.matmul %0, %1, %cst {dimension_numbers = #tpu.dot_dimension_numbers<[1], [0], [0], [1], [0, 0, 1, 1], [], []>} : vector<16x128xbf16>, vector<128x32xbf16>, vector<16x32xf32> -> vector<16x32xf32>
    %3 = vector.shape_cast %2 : vector<16x32xf32> to vector<1x16x32xf32>
    %c0_3 = arith.constant 0 : index
    %c0_4 = arith.constant 0 : index
    %4 = vector.load %arg4[%c0_3, %c0_4] : memref<16x32xf32, #tpu.memory_space<vmem>>, vector<16x32xf32>
    %5 = vector.shape_cast %4 : vector<16x32xf32> to vector<1x16x32xf32>
    %6 = arith.addf %3, %5 : vector<1x16x32xf32>
    %c0_5 = arith.constant 0 : index
    %c0_6 = arith.constant 0 : index
    %7 = vector.load %arg3[%c0_5, %c0_6] : memref<1x32xf32, #tpu.memory_space<vmem>>, vector<1x32xf32>
    %8 = vector.shape_cast %7 : vector<1x32xf32> to vector<1x1x32xf32>
    %c0_7 = arith.constant 0 : index
    %c0_8 = arith.constant 0 : index
    %c0_9 = arith.constant 0 : index
    %9 = vector.load %arg6[%c0_7, %c0_8, %c0_9] : memref<1x21x32xf32, #tpu.memory_space<vmem>>, vector<1x1x32xf32>
    tpu.vector_store %arg6[%c0_7, %c0_8, %c0_9], %8 {strides = array<i32>} : memref<1x21x32xf32, #tpu.memory_space<vmem>>, vector<1x1x32xf32>,
    %c0_10 = arith.constant 0 : index
    %c1 = arith.constant 1 : index
    %c0_11 = arith.constant 0 : index
    %10 = vector.load %arg6[%c0_10, %c1, %c0_11] : memref<1x21x32xf32, #tpu.memory_space<vmem>>, vector<1x16x32xf32>
    tpu.vector_store %arg6[%c0_10, %c1, %c0_11], %6 {strides = array<i32>} : memref<1x21x32xf32, #tpu.memory_space<vmem>>, vector<1x16x32xf32>,
    %c0_12 = arith.constant 0 : index
    %c0_13 = arith.constant 0 : index
    %11 = vector.load %arg5[%c0_12, %c0_13] : memref<4x32xf32, #tpu.memory_space<vmem>>, vector<4x32xf32>
    %12 = vector.shape_cast %11 : vector<4x32xf32> to vector<1x4x32xf32>
    %c0_14 = arith.constant 0 : index
    %c17 = arith.constant 17 : index
    %c0_15 = arith.constant 0 : index
    %13 = vector.load %arg6[%c0_14, %c17, %c0_15] : memref<1x21x32xf32, #tpu.memory_space<vmem>>, vector<1x4x32xf32>
    tpu.vector_store %arg6[%c0_14, %c17, %c0_15], %12 {strides = array<i32>} : memref<1x21x32xf32, #tpu.memory_space<vmem>>, vector<1x4x32xf32>,
    return
  }
  func.func @transform_0(%arg0: i32) -> (i32, i32) {
    %c0_i32 = arith.constant 0 : i32
    %c0_i32_0 = arith.constant 0 : i32
    return %arg0, %c0_i32 : i32, i32
  }
  func.func @transform_1(%arg0: i32) -> (i32, i32) {
    %c0_i32 = arith.constant 0 : i32
    %c0_i32_0 = arith.constant 0 : i32
    %c0_i32_1 = arith.constant 0 : i32
    return %c0_i32, %c0_i32_0 : i32, i32
  }
  func.func @transform_2(%arg0: i32) -> (i32, i32) {
    %c0_i32 = arith.constant 0 : i32
    %c0_i32_0 = arith.constant 0 : i32
    %c0_i32_1 = arith.constant 0 : i32
    return %c0_i32, %c0_i32_0 : i32, i32
  }
  func.func @transform_3(%arg0: i32) -> (i32, i32) {
    %c0_i32 = arith.constant 0 : i32
    %c0_i32_0 = arith.constant 0 : i32
    %c0_i32_1 = arith.constant 0 : i32
    return %c0_i32, %c0_i32_0 : i32, i32
  }
  func.func @transform_4(%arg0: i32) -> (i32, i32) {
    %c0_i32 = arith.constant 0 : i32
    %c0_i32_0 = arith.constant 0 : i32
    %c0_i32_1 = arith.constant 0 : i32
    return %c0_i32, %c0_i32_0 : i32, i32
  }
  func.func @transform_5(%arg0: i32) -> (i32, i32, i32) {
    %c0_i32 = arith.constant 0 : i32
    %c0_i32_0 = arith.constant 0 : i32
    %c0_i32_1 = arith.constant 0 : i32
    return %arg0, %c0_i32, %c0_i32_0 : i32, i32, i32
  }
}

</mosaic_0001>

<llo_original>
// kernel: tpu_custom_call.1
$region0: #{tpu_custom_call.1}
  #allocation0 [shape = 'u32[]', space=smem, size = 0x4, offset = 0x4, fixed_abs, tag = 'smem constant byte address 0x4 - core index']
  #allocation1 [shape = 'u32[72,128]{1,0:T(1,128)}', space=vmem, size = 0x9000, scoped, tag = 'internal scratch']
  %s0 = inlined_call_operand.vmem [shape: bf16[32,128], index: 0, kind: input, shape index: {}]
  %s1 = inlined_call_operand.vmem [shape: bf16[128,32], index: 1, kind: input, shape index: {}]
  %s2 = inlined_call_operand.vmem [shape: f32[1,32], index: 2, kind: input, shape index: {}]
  %s3 = inlined_call_operand.vmem [shape: f32[16,32], index: 3, kind: input, shape index: {}]
  %s4 = inlined_call_operand.vmem [shape: f32[4,32], index: 4, kind: input, shape index: {}]
  %s5 = inlined_call_operand.vmem [shape: f32[2,21,32], index: 5, kind: output, shape index: {}]
  %s6 = sld [smem:[#allocation0]]
  $region53: #{tpu_custom_call.1} parent=0
    _
  %s8 = ssub.s32 1, %s6
  %s9 = scalar_select 0, %s8, %s6
  loop: start=0, step=1, limit=4
  $region2: #{tpu_custom_call.1} parent=0 // loop_pre_header
    _
  $region3: #{tpu_custom_call.1} parent=0 // loop_header
    %s11 = sphi 0, %s15
    %p12 = scmp.ge.s32.totalorder %s11, 4
    %s21 = sphi 0, %s23
    %s24 = sphi 0, %s21
    %s25 = sphi 0, %s24
    %s41 = sphi 0, %s25
    %s45 = sphi 0, %s45
    %s47 = sphi 0, %s45
    %s48 = sphi 0, %s47
    %s62 = sphi 0, %s48
    %s66 = sphi 0, %s66
    %s68 = sphi 0, %s66
    %s69 = sphi 0, %s68
    %s83 = sphi 0, %s69
    %s87 = sphi 0, %s87
    %s89 = sphi 0, %s87
    %s90 = sphi 0, %s89
    %s104 = sphi 0, %s90
    %s108 = sphi 0, %s108
    %s110 = sphi 0, %s108
    %s111 = sphi 0, %s110
    %s125 = sphi 0, %s111
    %s131 = sphi 0, %s133
    %s134 = sphi 0, %s131
    %s135 = sphi 0, %s134
    %s151 = sphi 0, %s135
  $region4: #{tpu_custom_call.1} parent=0 // loop_header_branch
    %14 = sbr.rel (%p12) target = $region8
  $region5: #{tpu_custom_call.1} parent=0 // loop_body
    %s16 = ssub.s32 %s11, 1
    %s17 = ssub.s32 %s11, 2
    %s18 = sadd.s32 %s11, 1
    %s19 = ssub.s32 %s11, %s18
    %p20 = scmp.eq.s32.totalorder %s19, 0
    %s22 = sadd.s32 %s21, 1
    %s23 = scalar_select %p20, %s21, %s22
    %p26 = pneg %p20
    %p27 = scmp.eq.s32.totalorder %s11, 1
    %p28 = por %p26, %p27
    %p29 = scmp.ne.s32.totalorder %s21, %s24
    %p30 = scmp.eq.s32.totalorder %s11, 0
    %p31 = por %p29, %p30
    %p32 = scmp.ne.s32.totalorder %s21, %s24
    %p33 = scmp.eq.s32.totalorder %s16, 1
    %p34 = por %p32, %p33
    %p35 = scmp.ne.s32.totalorder %s24, %s25
    %p36 = scmp.eq.s32.totalorder %s16, 0
    %p37 = por %p35, %p36
    %p38 = scmp.ne.s32.totalorder %s24, %s25
    %p39 = scmp.eq.s32.totalorder %s17, 1
    %p40 = por %p38, %p39
    %p42 = scmp.ne.s32.totalorder %s25, %s41
    %p43 = scmp.eq.s32.totalorder %s17, 0
    %p44 = por %p42, %p43
    %s46 = sadd.s32 %s45, 1
    %p49 = scmp.eq.s32.totalorder %s11, 1
    %p50 = scmp.ne.s32.totalorder %s45, %s47
    %p51 = scmp.eq.s32.totalorder %s11, 0
    %p52 = por %p50, %p51
    %p53 = scmp.ne.s32.totalorder %s45, %s47
    %p54 = scmp.eq.s32.totalorder %s16, 1
    %p55 = por %p53, %p54
    %p56 = scmp.ne.s32.totalorder %s47, %s48
    %p57 = scmp.eq.s32.totalorder %s16, 0
    %p58 = por %p56, %p57
    %p59 = scmp.ne.s32.totalorder %s47, %s48
    %p60 = scmp.eq.s32.totalorder %s17, 1
    %p61 = por %p59, %p60
    %p63 = scmp.ne.s32.totalorder %s48, %s62
    %p64 = scmp.eq.s32.totalorder %s17, 0
    %p65 = por %p63, %p64
    %s67 = sadd.s32 %s66, 1
    %p70 = scmp.eq.s32.totalorder %s11, 1
    %p71 = scmp.ne.s32.totalorder %s66, %s68
    %p72 = scmp.eq.s32.totalorder %s11, 0
    %p73 = por %p71, %p72
    %p74 = scmp.ne.s32.totalorder %s66, %s68
    %p75 = scmp.eq.s32.totalorder %s16, 1
    %p76 = por %p74, %p75
    %p77 = scmp.ne.s32.totalorder %s68, %s69
    %p78 = scmp.eq.s32.totalorder %s16, 0
    %p79 = por %p77, %p78
    %p80 = scmp.ne.s32.totalorder %s68, %s69
    %p81 = scmp.eq.s32.totalorder %s17, 1
    %p82 = por %p80, %p81
    %p84 = scmp.ne.s32.totalorder %s69, %s83
    %p85 = scmp.eq.s32.totalorder %s17, 0
    %p86 = por %p84, %p85
    %s88 = sadd.s32 %s87, 1
    %p91 = scmp.eq.s32.totalorder %s11, 1
    %p92 = scmp.ne.s32.totalorder %s87, %s89
    %p93 = scmp.eq.s32.totalorder %s11, 0
    %p94 = por %p92, %p93
    %p95 = scmp.ne.s32.totalorder %s87, %s89
    %p96 = scmp.eq.s32.totalorder %s16, 1
    %p97 = por %p95, %p96
    %p98 = scmp.ne.s32.totalorder %s89, %s90
    %p99 = scmp.eq.s32.totalorder %s16, 0
    %p100 = por %p98, %p99
    %p101 = scmp.ne.s32.totalorder %s89, %s90
    %p102 = scmp.eq.s32.totalorder %s17, 1
    %p103 = por %p101, %p102
    %p105 = scmp.ne.s32.totalorder %s90, %s104
    %p106 = scmp.eq.s32.totalorder %s17, 0
    %p107 = por %p105, %p106
    %s109 = sadd.s32 %s108, 1
    %p112 = scmp.eq.s32.totalorder %s11, 1
    %p113 = scmp.ne.s32.totalorder %s108, %s110
    %p114 = scmp.eq.s32.totalorder %s11, 0
    %p115 = por %p113, %p114
    %p116 = scmp.ne.s32.totalorder %s108, %s110
    %p117 = scmp.eq.s32.totalorder %s16, 1
    %p118 = por %p116, %p117
    %p119 = scmp.ne.s32.totalorder %s110, %s111
    %p120 = scmp.eq.s32.totalorder %s16, 0
    %p121 = por %p119, %p120
    %p122 = scmp.ne.s32.totalorder %s110, %s111
    %p123 = scmp.eq.s32.totalorder %s17, 1
    %p124 = por %p122, %p123
    %p126 = scmp.ne.s32.totalorder %s111, %s125
    %p127 = scmp.eq.s32.totalorder %s17, 0
    %p128 = por %p126, %p127
    %s129 = ssub.s32 %s11, %s18
    %p130 = scmp.eq.s32.totalorder %s129, 0
    %s132 = sadd.s32 %s131, 1
    %s133 = scalar_select %p130, %s131, %s132
    %p136 = pneg %p130
    %p137 = scmp.eq.s32.totalorder %s11, 1
    %p138 = por %p136, %p137
    %p139 = scmp.ne.s32.totalorder %s131, %s134
    %p140 = scmp.eq.s32.totalorder %s11, 0
    %p141 = por %p139, %p140
    %p142 = scmp.ne.s32.totalorder %s131, %s134
    %p143 = scmp.eq.s32.totalorder %s16, 1
    %p144 = por %p142, %p143
    %p145 = scmp.ne.s32.totalorder %s134, %s135
    %p146 = scmp.eq.s32.totalorder %s16, 0
    %p147 = por %p145, %p146
    %p148 = scmp.ne.s32.totalorder %s134, %s135
    %p149 = scmp.eq.s32.totalorder %s17, 1
    %p150 = por %p148, %p149
    %p152 = scmp.ne.s32.totalorder %s135, %s151
    %p153 = scmp.eq.s32.totalorder %s17, 0
    %p154 = por %p152, %p153
    %p155 = scmp.le.s32.totalorder 1, %s11
    %p156 = scmp.lt.s32.totalorder %s11, 3
    %p157 = pnand %p155, %p156
    %p158 = pneg %p157
    // Predicated region
    $region9: #{tpu_custom_call.1} parent=5 // pred_check
      _
    $region10: #{tpu_custom_call.1} parent=5 // pred_check_branch
      %160 = sbr.rel (%p157) target = $region12
    $region11: #{tpu_custom_call.1} parent=5 // pred_region
      %s161 = ssub.s32 %s11, 1
      // Predicated region
      $region13: #{tpu_custom_call.1} parent=11 // pred_check
        %p162 = pneg %p58
      $region14: #{tpu_custom_call.1} parent=11 // pred_check_branch
        %164 = sbr.rel (%p162) target = $region16
      $region15: #{tpu_custom_call.1} parent=11 // pred_region
        _
      $region16: #{tpu_custom_call.1} parent=11 // pred_fallthru
        _
      // Predicated region
      $region17: #{tpu_custom_call.1} parent=11 // pred_check
        %p165 = pneg %p79
      $region18: #{tpu_custom_call.1} parent=11 // pred_check_branch
        %167 = sbr.rel (%p165) target = $region20
      $region19: #{tpu_custom_call.1} parent=11 // pred_region
        _
      $region20: #{tpu_custom_call.1} parent=11 // pred_fallthru
        _
      // Predicated region
      $region21: #{tpu_custom_call.1} parent=11 // pred_check
        %p168 = pneg %p100
      $region22: #{tpu_custom_call.1} parent=11 // pred_check_branch
        %170 = sbr.rel (%p168) target = $region24
      $region23: #{tpu_custom_call.1} parent=11 // pred_region
        _
      $region24: #{tpu_custom_call.1} parent=11 // pred_fallthru
        _
      // Predicated region
      $region25: #{tpu_custom_call.1} parent=11 // pred_check
        %p171 = pneg %p121
      $region26: #{tpu_custom_call.1} parent=11 // pred_check_branch
        %173 = sbr.rel (%p171) target = $region28
      $region27: #{tpu_custom_call.1} parent=11 // pred_region
        _
      $region28: #{tpu_custom_call.1} parent=11 // pred_fallthru
        _
    $region12: #{tpu_custom_call.1} parent=5 // pred_fallthru
      _
    %p174 = scmp.lt.s32.totalorder %s11, 2
    // Predicated region
    $region29: #{tpu_custom_call.1} parent=5 // pred_check
      %p175 = pneg %p174
    $region30: #{tpu_custom_call.1} parent=5 // pred_check_branch
      %177 = sbr.rel (%p175) target = $region32
    $region31: #{tpu_custom_call.1} parent=5 // pred_region
      // Predicated region
      $region33: #{tpu_custom_call.1} parent=31 // pred_check
        %p178 = pneg %p31
      $region34: #{tpu_custom_call.1} parent=31 // pred_check_branch
        %180 = sbr.rel (%p178) target = $region36
      $region35: #{tpu_custom_call.1} parent=31 // pred_region
        %s181 = smul.u32 2, %s11
        %p182 = scmp.lt.s32.totalorder %s181, 3
        %s183 = scalar_select %p182, %s181, 3
        %s184 = smul.addr %s183, 4
        %s185 = scalar_lea.vmem %s0, %s184
        %s186 = smul.u32 2, %s11
      $region36: #{tpu_custom_call.1} parent=31 // pred_fallthru
        _
    $region32: #{tpu_custom_call.1} parent=5 // pred_fallthru
      _
    %p187 = scmp.le.s32.totalorder 1, %s11
    %p188 = scmp.lt.s32.totalorder %s11, 3
    %p189 = pnand %p187, %p188
    %p190 = pneg %p189
    // Predicated region
    $region37: #{tpu_custom_call.1} parent=5 // pred_check
      _
    $region38: #{tpu_custom_call.1} parent=5 // pred_check_branch
      %192 = sbr.rel (%p189) target = $region40
    $region39: #{tpu_custom_call.1} parent=5 // pred_region
      %s193 = ssub.s32 %s11, 1
      %s194 = smul.u32 2, %s16
      %p195 = scmp.lt.s32.totalorder %s194, 3
      %s196 = scalar_select %p195, %s194, 3
      %s197 = smul.addr %s196, 4
      %s198 = scalar_lea.vmem %s0, %s197
      %p199 = pneg %p37
      %p200 = pneg %p34
      %p201 = pneg %p58
      %p202 = pneg %p55
      %p203 = pneg %p79
      %p204 = pneg %p76
      %p205 = pneg %p100
      %p206 = pneg %p97
      %p207 = pneg %p121
      %p208 = pneg %p118
      %p209 = pneg %p147
      %p210 = pneg %p144
      %p211 = scmp.lt.s32.totalorder %s16, 1
      %s212 = scalar_select %p211, %s16, 1
      %s213 = smul.addr %s212, 3
      %s214 = smul.addr %s213, 8
      %s215 = scalar_lea.vmem %s5, %s214
      %s216 = smul.u32 2, %s16
      %p217 = scmp.lt.s32.totalorder %s216, 3
      %s218 = scalar_select %p217, %s216, 3
      %s219 = smul.addr %s218, 4
      %s220 = scalar_lea.vmem %s0, %s219
      %s221 = smul.u32 2, %s16
      %p222 = scmp.lt.s32.totalorder %s16, 1
      %s223 = scalar_select %p222, %s16, 1
      %s224 = smul.addr %s223, 3
      %s225 = smul.addr %s224, 8
      %s226 = scalar_lea.vmem %s5, %s225
      %v227 = vld [vmem:[%s220] sm:$0xf]
      %v228 = vld [vmem:[%s220 + $0x4] sm:$0xf]
      %v229 = vld [vmem:[%s1] sm:$0xf]
      %v230 = vld [vmem:[%s1 + $0x4] sm:$0xf]
      %v231 = vld [vmem:[%s1 + $0x8] sm:$0xf]
      %v232 = vld [vmem:[%s1 + $0xc] sm:$0xf]
      %v233 = vld [vmem:[%s1 + $0x10] sm:$0xf]
      %v234 = vld [vmem:[%s1 + $0x14] sm:$0xf]
      %v235 = vld [vmem:[%s1 + $0x18] sm:$0xf]
      %v236 = vld [vmem:[%s1 + $0x1c] sm:$0xf]
      %v237 = vld [vmem:[%s1 + $0x20] sm:$0xf]
      %v238 = vld [vmem:[%s1 + $0x24] sm:$0xf]
      %v239 = vld [vmem:[%s1 + $0x28] sm:$0xf]
      %v240 = vld [vmem:[%s1 + $0x2c] sm:$0xf]
      %v241 = vld [vmem:[%s1 + $0x30] sm:$0xf]
      %v242 = vld [vmem:[%s1 + $0x34] sm:$0xf]
      %v243 = vld [vmem:[%s1 + $0x38] sm:$0xf]
      %v244 = vld [vmem:[%s1 + $0x3c] sm:$0xf]
      %v247 = vunpack.c.l.b16 %v227
      %v248 = vunpack.c.l.b16 %v228
      %v249 = vpack.c.b16 %v248, %v247
      %v267 = vunpack.c.l.b16 %v229
      %v268 = vunpack.c.l.b16 %v230
      %v269 = vunpack.c.l.b16 %v231
      %v270 = vunpack.c.l.b16 %v232
      %v271 = vunpack.c.l.b16 %v233
      %v272 = vunpack.c.l.b16 %v234
      %v273 = vunpack.c.l.b16 %v235
      %v274 = vunpack.c.l.b16 %v236
      %v275 = vunpack.c.l.b16 %v237
      %v276 = vunpack.c.l.b16 %v238
      %v277 = vunpack.c.l.b16 %v239
      %v278 = vunpack.c.l.b16 %v240
      %v279 = vunpack.c.l.b16 %v241
      %v280 = vunpack.c.l.b16 %v242
      %v281 = vunpack.c.l.b16 %v243
      %v282 = vunpack.c.l.b16 %v244
      %v283 = vpack.c.b16 %v268, %v267
      %v284 = vpack.c.b16 %v270, %v269
      %v285 = vpack.c.b16 %v272, %v271
      %v286 = vpack.c.b16 %v274, %v273
      %v287 = vpack.c.b16 %v276, %v275
      %v288 = vpack.c.b16 %v278, %v277
      %v289 = vpack.c.b16 %v280, %v279
      %v290 = vpack.c.b16 %v282, %v281
      %299 = vmatpush.bf16.msra.mxu0 %v290
      %300 = vmatpush.bf16.msra.mxu0 %v289
      %301 = vmatpush.bf16.msra.mxu0 %v288
      %302 = vmatpush.bf16.msra.mxu0 %v287
      %303 = vmatpush.bf16.msra.mxu0 %v286
      %304 = vmatpush.bf16.msra.mxu0 %v285
      %305 = vmatpush.bf16.msra.mxu0 %v284
      %306 = vmatpush.bf16.msra.mxu0 %v283
      %307 = vmatmul.bf16.gmra.mxu0 %v249
      %v308 = vpop.f32.mrf.mxu0
      %v309 = vadd.f32 0.0, %v308
      %v310 = vpop.f32.mrf.mxu0
      %v311 = vadd.f32 0.0, %v310
      %312 = vdwg.mxu0
      %v313 = vld [vmem:[%s3] sm:$0xff]
      %v314 = vld [vmem:[%s3 + $0x8] sm:$0xff]
      %v315 = vadd.f32 %v309, %v313
      %v316 = vadd.f32 %v311, %v314
      %v317 = vld [vmem:[%s2] sm:$0x1]
      %vm318 = vcmask 253952
      %319 = vst.msk [vmem:[%s226] sm:$0x1] %vm318, %v317
      %vm320 = vcmask 261120
      %321 = vst.msk [vmem:[%s226 + $0x1] sm:$0xff] %vm320, %v315
      %322 = vst.msk [vmem:[%s226 + $0x9] sm:$0xff] %vm320, %v316
      %v323 = vld [vmem:[%s4] sm:$0xf]
      %vm324 = vcmask 257024
      %325 = vst.msk [vmem:[%s226 + $0x11] sm:$0xf] %vm324, %v323
      %p326 = scmp.lt.s32.totalorder %s16, 1
      %s327 = scalar_select %p326, %s16, 1
      %s328 = smul.addr %s327, 3
      %s329 = smul.addr %s328, 8
      %s330 = scalar_lea.vmem %s5, %s329
      // Predicated region
      $region41: #{tpu_custom_call.1} parent=39 // pred_check
        %p331 = pneg %p144
      $region42: #{tpu_custom_call.1} parent=39 // pred_check_branch
        %333 = sbr.rel (%p331) target = $region44
      $region43: #{tpu_custom_call.1} parent=39 // pred_region
        _
      $region44: #{tpu_custom_call.1} parent=39 // pred_fallthru
        _
    $region40: #{tpu_custom_call.1} parent=5 // pred_fallthru
      _
    %p334 = scmp.le.s32.totalorder 2, %s11
    // Predicated region
    $region45: #{tpu_custom_call.1} parent=5 // pred_check
      %p335 = pneg %p334
    $region46: #{tpu_custom_call.1} parent=5 // pred_check_branch
      %337 = sbr.rel (%p335) target = $region48
    $region47: #{tpu_custom_call.1} parent=5 // pred_region
      %s338 = ssub.s32 %s11, 2
      // Predicated region
      $region49: #{tpu_custom_call.1} parent=47 // pred_check
        %p339 = pneg %p150
      $region50: #{tpu_custom_call.1} parent=47 // pred_check_branch
        %341 = sbr.rel (%p339) target = $region52
      $region51: #{tpu_custom_call.1} parent=47 // pred_region
        %p342 = scmp.lt.s32.totalorder %s17, 1
        %s343 = scalar_select %p342, %s17, 1
        %s344 = smul.addr %s343, 3
        %s345 = smul.addr %s344, 8
        %s346 = scalar_lea.vmem %s5, %s345
      $region52: #{tpu_custom_call.1} parent=47 // pred_fallthru
        _
    $region48: #{tpu_custom_call.1} parent=5 // pred_fallthru
      _
  $region6: #{tpu_custom_call.1} parent=0 // loop_footer
    %s15 = sadd.s32 1, %s11
  $region7: #{tpu_custom_call.1} parent=0 // loop_footer_branch
    %10 = sbr.rel target = $region3
  $region8: #{tpu_custom_call.1} parent=0 // loop_exit
    _

// kernel: tpu_custom_call.1
$region0: #{tpu_custom_call.1}
  #allocation0 [shape = 'u32[]', space=smem, size = 0x4, offset = 0x4, fixed_abs, tag = 'smem constant byte address 0x4 - core index']
  #allocation1 [shape = 'u32[72,128]{1,0:T(1,128)}', space=vmem, size = 0x9000, scoped, tag = 'internal scratch']
  %s0 = inlined_call_operand.vmem [shape: bf16[32,128], index: 0, kind: input, shape index: {}]
  %s1 = inlined_call_operand.vmem [shape: bf16[128,32], index: 1, kind: input, shape index: {}]
  %s2 = inlined_call_operand.vmem [shape: f32[1,32], index: 2, kind: input, shape index: {}]
  %s3 = inlined_call_operand.vmem [shape: f32[16,32], index: 3, kind: input, shape index: {}]
  %s4 = inlined_call_operand.vmem [shape: f32[4,32], index: 4, kind: input, shape index: {}]
  %s5 = inlined_call_operand.vmem [shape: f32[2,21,32], index: 5, kind: output, shape index: {}]
  %s6 = sld [smem:[#allocation0]]
  $region53: #{tpu_custom_call.1} parent=0
    _
  %s8 = ssub.s32 1, %s6
  %s9 = scalar_select 0, %s8, %s6
  loop: start=0, step=1, limit=4
  $region2: #{tpu_custom_call.1} parent=0 // loop_pre_header
    _
  $region3: #{tpu_custom_call.1} parent=0 // loop_header
    %s11 = sphi 0, %s15
    %p12 = scmp.ge.s32.totalorder %s11, 4
    %s21 = sphi 0, %s23
    %s24 = sphi 0, %s21
    %s25 = sphi 0, %s24
    %s41 = sphi 0, %s25
    %s45 = sphi 0, %s45
    %s47 = sphi 0, %s45
    %s48 = sphi 0, %s47
    %s62 = sphi 0, %s48
    %s66 = sphi 0, %s66
    %s68 = sphi 0, %s66
    %s69 = sphi 0, %s68
    %s83 = sphi 0, %s69
    %s87 = sphi 0, %s87
    %s89 = sphi 0, %s87
    %s90 = sphi 0, %s89
    %s104 = sphi 0, %s90
    %s108 = sphi 0, %s108
    %s110 = sphi 0, %s108
    %s111 = sphi 0, %s110
    %s125 = sphi 0, %s111
    %s131 = sphi 0, %s133
    %s134 = sphi 0, %s131
    %s135 = sphi 0, %s134
    %s151 = sphi 0, %s135
  $region4: #{tpu_custom_call.1} parent=0 // loop_header_branch
    %14 = sbr.rel (%p12) target = $region8
  $region5: #{tpu_custom_call.1} parent=0 // loop_body
    %s16 = ssub.s32 %s11, 1
    %s17 = ssub.s32 %s11, 2
    %s18 = sadd.s32 %s11, 1
    %s19 = ssub.s32 %s11, %s18
    %p20 = scmp.eq.s32.totalorder %s19, 0
    %s22 = sadd.s32 %s21, 1
    %s23 = scalar_select %p20, %s21, %s22
    %p26 = pneg %p20
    %p27 = scmp.eq.s32.totalorder %s11, 1
    %p28 = por %p26, %p27
    %p29 = scmp.ne.s32.totalorder %s21, %s24
    %p30 = scmp.eq.s32.totalorder %s11, 0
    %p31 = por %p29, %p30
    %p32 = scmp.ne.s32.totalorder %s21, %s24
    %p33 = scmp.eq.s32.totalorder %s16, 1
    %p34 = por %p32, %p33
    %p35 = scmp.ne.s32.totalorder %s24, %s25
    %p36 = scmp.eq.s32.totalorder %s16, 0
    %p37 = por %p35, %p36
    %p38 = scmp.ne.s32.totalorder %s24, %s25
    %p39 = scmp.eq.s32.totalorder %s17, 1
    %p40 = por %p38, %p39
    %p42 = scmp.ne.s32.totalorder %s25, %s41
    %p43 = scmp.eq.s32.totalorder %s17, 0
    %p44 = por %p42, %p43
    %s46 = sadd.s32 %s45, 1
    %p49 = scmp.eq.s32.totalorder %s11, 1
    %p50 = scmp.ne.s32.totalorder %s45, %s47
    %p51 = scmp.eq.s32.totalorder %s11, 0
    %p52 = por %p50, %p51
    %p53 = scmp.ne.s32.totalorder %s45, %s47
    %p54 = scmp.eq.s32.totalorder %s16, 1
    %p55 = por %p53, %p54
    %p56 = scmp.ne.s32.totalorder %s47, %s48
    %p57 = scmp.eq.s32.totalorder %s16, 0
    %p58 = por %p56, %p57
    %p59 = scmp.ne.s32.totalorder %s47, %s48
    %p60 = scmp.eq.s32.totalorder %s17, 1
    %p61 = por %p59, %p60
    %p63 = scmp.ne.s32.totalorder %s48, %s62
    %p64 = scmp.eq.s32.totalorder %s17, 0
    %p65 = por %p63, %p64
    %s67 = sadd.s32 %s66, 1
    %p70 = scmp.eq.s32.totalorder %s11, 1
    %p71 = scmp.ne.s32.totalorder %s66, %s68
    %p72 = scmp.eq.s32.totalorder %s11, 0
    %p73 = por %p71, %p72
    %p74 = scmp.ne.s32.totalorder %s66, %s68
    %p75 = scmp.eq.s32.totalorder %s16, 1
    %p76 = por %p74, %p75
    %p77 = scmp.ne.s32.totalorder %s68, %s69
    %p78 = scmp.eq.s32.totalorder %s16, 0
    %p79 = por %p77, %p78
    %p80 = scmp.ne.s32.totalorder %s68, %s69
    %p81 = scmp.eq.s32.totalorder %s17, 1
    %p82 = por %p80, %p81
    %p84 = scmp.ne.s32.totalorder %s69, %s83
    %p85 = scmp.eq.s32.totalorder %s17, 0
    %p86 = por %p84, %p85
    %s88 = sadd.s32 %s87, 1
    %p91 = scmp.eq.s32.totalorder %s11, 1
    %p92 = scmp.ne.s32.totalorder %s87, %s89
    %p93 = scmp.eq.s32.totalorder %s11, 0
    %p94 = por %p92, %p93
    %p95 = scmp.ne.s32.totalorder %s87, %s89
    %p96 = scmp.eq.s32.totalorder %s16, 1
    %p97 = por %p95, %p96
    %p98 = scmp.ne.s32.totalorder %s89, %s90
    %p99 = scmp.eq.s32.totalorder %s16, 0
    %p100 = por %p98, %p99
    %p101 = scmp.ne.s32.totalorder %s89, %s90
    %p102 = scmp.eq.s32.totalorder %s17, 1
    %p103 = por %p101, %p102
    %p105 = scmp.ne.s32.totalorder %s90, %s104
    %p106 = scmp.eq.s32.totalorder %s17, 0
    %p107 = por %p105, %p106
    %s109 = sadd.s32 %s108, 1
    %p112 = scmp.eq.s32.totalorder %s11, 1
    %p113 = scmp.ne.s32.totalorder %s108, %s110
    %p114 = scmp.eq.s32.totalorder %s11, 0
    %p115 = por %p113, %p114
    %p116 = scmp.ne.s32.totalorder %s108, %s110
    %p117 = scmp.eq.s32.totalorder %s16, 1
    %p118 = por %p116, %p117
    %p119 = scmp.ne.s32.totalorder %s110, %s111
    %p120 = scmp.eq.s32.totalorder %s16, 0
    %p121 = por %p119, %p120
    %p122 = scmp.ne.s32.totalorder %s110, %s111
    %p123 = scmp.eq.s32.totalorder %s17, 1
    %p124 = por %p122, %p123
    %p126 = scmp.ne.s32.totalorder %s111, %s125
    %p127 = scmp.eq.s32.totalorder %s17, 0
    %p128 = por %p126, %p127
    %s129 = ssub.s32 %s11, %s18
    %p130 = scmp.eq.s32.totalorder %s129, 0
    %s132 = sadd.s32 %s131, 1
    %s133 = scalar_select %p130, %s131, %s132
    %p136 = pneg %p130
    %p137 = scmp.eq.s32.totalorder %s11, 1
    %p138 = por %p136, %p137
    %p139 = scmp.ne.s32.totalorder %s131, %s134
    %p140 = scmp.eq.s32.totalorder %s11, 0
    %p141 = por %p139, %p140
    %p142 = scmp.ne.s32.totalorder %s131, %s134
    %p143 = scmp.eq.s32.totalorder %s16, 1
    %p144 = por %p142, %p143
    %p145 = scmp.ne.s32.totalorder %s134, %s135
    %p146 = scmp.eq.s32.totalorder %s16, 0
    %p147 = por %p145, %p146
    %p148 = scmp.ne.s32.totalorder %s134, %s135
    %p149 = scmp.eq.s32.totalorder %s17, 1
    %p150 = por %p148, %p149
    %p152 = scmp.ne.s32.totalorder %s135, %s151
    %p153 = scmp.eq.s32.totalorder %s17, 0
    %p154 = por %p152, %p153
    %p155 = scmp.le.s32.totalorder 1, %s11
    %p156 = scmp.lt.s32.totalorder %s11, 3
    %p157 = pnand %p155, %p156
    %p158 = pneg %p157
    // Predicated region
    $region9: #{tpu_custom_call.1} parent=5 // pred_check
      _
    $region10: #{tpu_custom_call.1} parent=5 // pred_check_branch
      %160 = sbr.rel (%p157) target = $region12
    $region11: #{tpu_custom_call.1} parent=5 // pred_region
      %s161 = ssub.s32 %s11, 1
      // Predicated region
      $region13: #{tpu_custom_call.1} parent=11 // pred_check
        %p162 = pneg %p58
      $region14: #{tpu_custom_call.1} parent=11 // pred_check_branch
        %164 = sbr.rel (%p162) target = $region16
      $region15: #{tpu_custom_call.1} parent=11 // pred_region
        _
      $region16: #{tpu_custom_call.1} parent=11 // pred_fallthru
        _
      // Predicated region
      $region17: #{tpu_custom_call.1} parent=11 // pred_check
        %p165 = pneg %p79
      $region18: #{tpu_custom_call.1} parent=11 // pred_check_branch
        %167 = sbr.rel (%p165) target = $region20
      $region19: #{tpu_custom_call.1} parent=11 // pred_region
        _
      $region20: #{tpu_custom_call.1} parent=11 // pred_fallthru
        _
      // Predicated region
      $region21: #{tpu_custom_call.1} parent=11 // pred_check
        %p168 = pneg %p100
      $region22: #{tpu_custom_call.1} parent=11 // pred_check_branch
        %170 = sbr.rel (%p168) target = $region24
      $region23: #{tpu_custom_call.1} parent=11 // pred_region
        _
      $region24: #{tpu_custom_call.1} parent=11 // pred_fallthru
        _
      // Predicated region
      $region25: #{tpu_custom_call.1} parent=11 // pred_check
        %p171 = pneg %p121
      $region26: #{tpu_custom_call.1} parent=11 // pred_check_branch
        %173 = sbr.rel (%p171) target = $region28
      $region27: #{tpu_custom_call.1} parent=11 // pred_region
        _
      $region28: #{tpu_custom_call.1} parent=11 // pred_fallthru
        _
    $region12: #{tpu_custom_call.1} parent=5 // pred_fallthru
      _
    %p174 = scmp.lt.s32.totalorder %s11, 2
    // Predicated region
    $region29: #{tpu_custom_call.1} parent=5 // pred_check
      %p175 = pneg %p174
    $region30: #{tpu_custom_call.1} parent=5 // pred_check_branch
      %177 = sbr.rel (%p175) target = $region32
    $region31: #{tpu_custom_call.1} parent=5 // pred_region
      // Predicated region
      $region33: #{tpu_custom_call.1} parent=31 // pred_check
        %p178 = pneg %p31
      $region34: #{tpu_custom_call.1} parent=31 // pred_check_branch
        %180 = sbr.rel (%p178) target = $region36
      $region35: #{tpu_custom_call.1} parent=31 // pred_region
        %s181 = smul.u32 2, %s11
        %p182 = scmp.lt.s32.totalorder %s181, 3
        %s183 = scalar_select %p182, %s181, 3
        %s184 = smul.addr %s183, 4
        %s185 = scalar_lea.vmem %s0, %s184
        %s186 = smul.u32 2, %s11
      $region36: #{tpu_custom_call.1} parent=31 // pred_fallthru
        _
    $region32: #{tpu_custom_call.1} parent=5 // pred_fallthru
      _
    %p187 = scmp.le.s32.totalorder 1, %s11
    %p188 = scmp.lt.s32.totalorder %s11, 3
    %p189 = pnand %p187, %p188
    %p190 = pneg %p189
    // Predicated region
    $region37: #{tpu_custom_call.1} parent=5 // pred_check
      _
    $region38: #{tpu_custom_call.1} parent=5 // pred_check_branch
      %192 = sbr.rel (%p189) target = $region40
    $region39: #{tpu_custom_call.1} parent=5 // pred_region
      %s193 = ssub.s32 %s11, 1
      %s194 = smul.u32 2, %s16
      %p195 = scmp.lt.s32.totalorder %s194, 3
      %s196 = scalar_select %p195, %s194, 3
      %s197 = smul.addr %s196, 4
      %s198 = scalar_lea.vmem %s0, %s197
      %p199 = pneg %p37
      %p200 = pneg %p34
      %p201 = pneg %p58
      %p202 = pneg %p55
      %p203 = pneg %p79
      %p204 = pneg %p76
      %p205 = pneg %p100
      %p206 = pneg %p97
      %p207 = pneg %p121
      %p208 = pneg %p118
      %p209 = pneg %p147
      %p210 = pneg %p144
      %p211 = scmp.lt.s32.totalorder %s16, 1
      %s212 = scalar_select %p211, %s16, 1
      %s213 = smul.addr %s212, 3
      %s214 = smul.addr %s213, 8
      %s215 = scalar_lea.vmem %s5, %s214
      %s216 = smul.u32 2, %s16
      %p217 = scmp.lt.s32.totalorder %s216, 3
      %s218 = scalar_select %p217, %s216, 3
      %s219 = smul.addr %s218, 4
      %s220 = scalar_lea.vmem %s0, %s219
      %s221 = smul.u32 2, %s16
      %p222 = scmp.lt.s32.totalorder %s16, 1
      %s223 = scalar_select %p222, %s16, 1
      %s224 = smul.addr %s223, 3
      %s225 = smul.addr %s224, 8
      %s226 = scalar_lea.vmem %s5, %s225
      %v227 = vld [vmem:[%s220] sm:$0xf]
      %v228 = vld [vmem:[%s220 + $0x4] sm:$0xf]
      %v229 = vld [vmem:[%s1] sm:$0xf]
      %v230 = vld [vmem:[%s1 + $0x4] sm:$0xf]
      %v231 = vld [vmem:[%s1 + $0x8] sm:$0xf]
      %v232 = vld [vmem:[%s1 + $0xc] sm:$0xf]
      %v233 = vld [vmem:[%s1 + $0x10] sm:$0xf]
      %v234 = vld [vmem:[%s1 + $0x14] sm:$0xf]
      %v235 = vld [vmem:[%s1 + $0x18] sm:$0xf]
      %v236 = vld [vmem:[%s1 + $0x1c] sm:$0xf]
      %v237 = vld [vmem:[%s1 + $0x20] sm:$0xf]
      %v238 = vld [vmem:[%s1 + $0x24] sm:$0xf]
      %v239 = vld [vmem:[%s1 + $0x28] sm:$0xf]
      %v240 = vld [vmem:[%s1 + $0x2c] sm:$0xf]
      %v241 = vld [vmem:[%s1 + $0x30] sm:$0xf]
      %v242 = vld [vmem:[%s1 + $0x34] sm:$0xf]
      %v243 = vld [vmem:[%s1 + $0x38] sm:$0xf]
      %v244 = vld [vmem:[%s1 + $0x3c] sm:$0xf]
      %v247 = vunpack.c.l.b16 %v227
      %v248 = vunpack.c.l.b16 %v228
      %v249 = vpack.c.b16 %v248, %v247
      %v267 = vunpack.c.l.b16 %v229
      %v268 = vunpack.c.l.b16 %v230
      %v269 = vunpack.c.l.b16 %v231
      %v270 = vunpack.c.l.b16 %v232
      %v271 = vunpack.c.l.b16 %v233
      %v272 = vunpack.c.l.b16 %v234
      %v273 = vunpack.c.l.b16 %v235
      %v274 = vunpack.c.l.b16 %v236
      %v275 = vunpack.c.l.b16 %v237
      %v276 = vunpack.c.l.b16 %v238
      %v277 = vunpack.c.l.b16 %v239
      %v278 = vunpack.c.l.b16 %v240
      %v279 = vunpack.c.l.b16 %v241
      %v280 = vunpack.c.l.b16 %v242
      %v281 = vunpack.c.l.b16 %v243
      %v282 = vunpack.c.l.b16 %v244
      %v283 = vpack.c.b16 %v268, %v267
      %v284 = vpack.c.b16 %v270, %v269
      %v285 = vpack.c.b16 %v272, %v271
      %v286 = vpack.c.b16 %v274, %v273
      %v287 = vpack.c.b16 %v276, %v275
      %v288 = vpack.c.b16 %v278, %v277
      %v289 = vpack.c.b16 %v280, %v279
      %v290 = vpack.c.b16 %v282, %v281
      %299 = vmatpush.bf16.msra.mxu0 %v290
      %300 = vmatpush.bf16.msra.mxu0 %v289
      %301 = vmatpush.bf16.msra.mxu0 %v288
      %302 = vmatpush.bf16.msra.mxu0 %v287
      %303 = vmatpush.bf16.msra.mxu0 %v286
      %304 = vmatpush.bf16.msra.mxu0 %v285
      %305 = vmatpush.bf16.msra.mxu0 %v284
      %306 = vmatpush.bf16.msra.mxu0 %v283
      %307 = vmatmul.bf16.gmra.mxu0 %v249
      %v308 = vpop.f32.mrf.mxu0
      %v309 = vadd.f32 0.0, %v308
      %v310 = vpop.f32.mrf.mxu0
      %v311 = vadd.f32 0.0, %v310
      %312 = vdwg.mxu0
      %v313 = vld [vmem:[%s3] sm:$0xff]
      %v314 = vld [vmem:[%s3 + $0x8] sm:$0xff]
      %v315 = vadd.f32 %v309, %v313
      %v316 = vadd.f32 %v311, %v314
      %v317 = vld [vmem:[%s2] sm:$0x1]
      %vm318 = vcmask 253952
      %319 = vst.msk [vmem:[%s226] sm:$0x1] %vm318, %v317
      %vm320 = vcmask 261120
      %321 = vst.msk [vmem:[%s226 + $0x1] sm:$0xff] %vm320, %v315
      %322 = vst.msk [vmem:[%s226 + $0x9] sm:$0xff] %vm320, %v316
      %v323 = vld [vmem:[%s4] sm:$0xf]
      %vm324 = vcmask 257024
      %325 = vst.msk [vmem:[%s226 + $0x11] sm:$0xf] %vm324, %v323
      %p326 = scmp.lt.s32.totalorder %s16, 1
      %s327 = scalar_select %p326, %s16, 1
      %s328 = smul.addr %s327, 3
      %s329 = smul.addr %s328, 8
      %s330 = scalar_lea.vmem %s5, %s329
      // Predicated region
      $region41: #{tpu_custom_call.1} parent=39 // pred_check
        %p331 = pneg %p144
      $region42: #{tpu_custom_call.1} parent=39 // pred_check_branch
        %333 = sbr.rel (%p331) target = $region44
      $region43: #{tpu_custom_call.1} parent=39 // pred_region
        _
      $region44: #{tpu_custom_call.1} parent=39 // pred_fallthru
        _
    $region40: #{tpu_custom_call.1} parent=5 // pred_fallthru
      _
    %p334 = scmp.le.s32.totalorder 2, %s11
    // Predicated region
    $region45: #{tpu_custom_call.1} parent=5 // pred_check
      %p335 = pneg %p334
    $region46: #{tpu_custom_call.1} parent=5 // pred_check_branch
      %337 = sbr.rel (%p335) target = $region48
    $region47: #{tpu_custom_call.1} parent=5 // pred_region
      %s338 = ssub.s32 %s11, 2
      // Predicated region
      $region49: #{tpu_custom_call.1} parent=47 // pred_check
        %p339 = pneg %p150
      $region50: #{tpu_custom_call.1} parent=47 // pred_check_branch
        %341 = sbr.rel (%p339) target = $region52
      $region51: #{tpu_custom_call.1} parent=47 // pred_region
        %p342 = scmp.lt.s32.totalorder %s17, 1
        %s343 = scalar_select %p342, %s17, 1
        %s344 = smul.addr %s343, 3
        %s345 = smul.addr %s344, 8
        %s346 = scalar_lea.vmem %s5, %s345
      $region52: #{tpu_custom_call.1} parent=47 // pred_fallthru
        _
    $region48: #{tpu_custom_call.1} parent=5 // pred_fallthru
      _
  $region6: #{tpu_custom_call.1} parent=0 // loop_footer
    %s15 = sadd.s32 1, %s11
  $region7: #{tpu_custom_call.1} parent=0 // loop_footer_branch
    %10 = sbr.rel target = $region3
  $region8: #{tpu_custom_call.1} parent=0 // loop_exit
    _

</llo_original>
